<compile_context>
chip_gen: v5e
topology: v5e:2x2
jax: 0.10.0
libtpu: 0.0.40
codegen_flags: <defaults>
</compile_context>

<pallas_src>
import functools

import jax
import jax.numpy as jnp
from jax.experimental import pallas as pl
from jax.experimental.pallas import tpu as pltpu


# ----------------------------- Pallas kernels ------------------------------

def _mask_kernel(x_ref, fc_ref, o_ref):
    # x_ref/o_ref: (rb, H*W) f32 block, one row per (batch, channel) pair.
    # fc_ref:      (rb, 2)   f32 per-row depthwise 1x1 conv params [w, b].
    x = x_ref[...]
    fc = fc_ref[...]
    # AvgPool3d(kernel=(1,32,32)) on a 32x32 map == global mean per (b, c).
    mean = jnp.mean(x, axis=1, keepdims=True)                    # (rb, 1)
    # depthwise 1x1 conv (groups=C) + sigmoid; bilinear upsample of a 1x1 map
    # is a constant -> per-(b,c) scalar threshold broadcast over the lanes.
    th = jax.nn.sigmoid(mean * fc[:, 0:1] + fc[:, 1:2])          # (rb, 1)
    o_ref[...] = jnp.where(x > th, 0.0, x)


def _spectral_kernel(x_ref, w_ref, l_ref, b_ref, o_ref):
    # Single step: BOTH mode blocks ("up" and "down") fused.
    # x_ref: (2, 2, C, B*M)  [slab(up/dn), real/imag, C, lane=b*M+m]
    # w_ref: (2, 2, C, B*M)  per-mode complex weights, pre-tiled over batch
    # l_ref: (4D, 4C)        block-diag packed channel mix [[L1p,0],[0,L2p]]
    # b_ref: (4D, 1)         packed bias [b1r; b1i; b2r; b2i]
    # o_ref: (4D, B*M)       packed output [up_r; up_i; dn_r; dn_i]
    x = x_ref[...]
    w = w_ref[...]
    xr, xi = x[:, 0], x[:, 1]                          # (2, C, B*M)
    wr, wi = w[:, 0], w[:, 1]

    # einsum('bcxy,cxy->bcxy'): per-mode complex multiply (VPU), both slabs.
    yr = xr * wr - xi * wi                             # (2, C, B*M)
    yi = xr * wi + xi * wr

    # Row order must match the block-diagonal weight: [yr_up; yi_up; yr_dn; yi_dn]
    y = jnp.concatenate([yr[0], yi[0], yr[1], yi[1]], axis=0)    # (4C, B*M)

    # einsum('bchw,cd->bdhw') for real AND imag of BOTH mode blocks in one dot.
    o_ref[...] = (jnp.dot(l_ref[...], y, preferred_element_type=jnp.float32)
                  + b_ref[...])


# ------------------------------- wrappers -----------------------------------

def _row_block(R, HW, budget_bytes=2 << 20):
    # Row-block of the (B*C, H*W) slab. <= 2 MiB per block so double-buffered
    # in+out (4x) stays under every generation's scoped-VMEM default
    # (v5e 16 MiB, v6e/v7x 32 MiB; v7x physical is only 64 MiB).
    if R <= 8 or R % 8 != 0:
        # TODO(synk): full-extent fallback can exceed v7x VMEM for very large
        # C*H*W with C % 8 != 0; would need an HW-split two-pass mean.
        return R
    rb = min(R, max(8, (budget_bytes // (HW * 4)) // 8 * 8))
    while R % rb:
        rb -= 8
    return rb


def mask_input(x, fc_packed):
    # x: (B, C, H, W) f32; fc_packed: (B*C, 2) f32 (pre-tiled once).
    B, C, H, W = x.shape
    HW = H * W
    R = B * C
    assert fc_packed.shape == (R, 2), fc_packed.shape
    rb = _row_block(R, HW)
    x2 = x.reshape(R, HW)                              # rows=(b,c), lanes=spatial
    out = pl.pallas_call(
        _mask_kernel,
        out_shape=jax.ShapeDtypeStruct((R, HW), x.dtype),
        grid=(R // rb,),
        in_specs=[
            pl.BlockSpec((rb, HW), lambda r: (r, 0)),
            pl.BlockSpec((rb, 2), lambda r: (r, 0)),
        ],
        out_specs=pl.BlockSpec((rb, HW), lambda r: (r, 0)),
        compiler_params=pltpu.CompilerParams(
            dimension_semantics=("parallel",)),
    )(x2, fc_packed)
    return out.reshape(B, C, H, W)


def spectral_apply(x_ft, packed, modes1, modes2):
    # x_ft: (B, C, H, W//2+1) c64.  Returns (up, down), each (B,D,m1,m2) c64.
    B, C = x_ft.shape[0], x_ft.shape[1]
    M = modes1 * modes2
    BM = B * M
    D = packed["lin"].shape[0] // 4
    assert D == C, "out_ft scatter requires out_channels == in_channels"
    assert packed["wmode"].shape == (2, 2, C, BM), (
        "packed params were built for a different batch size")

    up = x_ft[:, :, :modes1, :modes2]
    dn = x_ft[:, :, -modes1:, :modes2]

    def planes(slab):
        # (B, C, m1, m2) c64 -> (2, C, B*M) f32 with lane = b*M + m
        p = jnp.stack([jnp.real(slab), jnp.imag(slab)], axis=0)   # (2,B,C,m1,m2)
        return (p.reshape(2, B, C, M)
                 .transpose(0, 2, 1, 3)
                 .reshape(2, C, BM)
                 .astype(jnp.float32))

    x_packed = jnp.stack([planes(up), planes(dn)], axis=0)        # (2, 2, C, BM)

    # Whole thing in one launch (no grid): tiny operands, all-VMEM.
    out = pl.pallas_call(
        _spectral_kernel,
        out_shape=jax.ShapeDtypeStruct((4 * D, BM), jnp.float32),
    )(x_packed, packed["wmode"], packed["lin"], packed["bias"])

    # rows: [up_r(D), up_i(D), dn_r(D), dn_i(D)] -> complex (2, B, D, m1, m2)
    o = out.reshape(2, 2, D, B, M)                     # (slab, r/i, d, b, m)
    oc = o[:, 0] + 1j * o[:, 1]                        # (slab, d, b, m) c64
    oc = oc.transpose(0, 2, 1, 3).reshape(2, B, D, modes1, modes2)
    return oc[0], oc[1]


def ffo_conv2d_forward(x, packed, modes1, modes2):
    # size = 32 > 16  =>  module's `full == False` branch
    B, C, H, W = x.shape
    x_masked = mask_input(x, packed["fc"])
    # TODO(synk): rfft2 / irfft2 stay in plain JAX (no clean Pallas FFT primitive).
    x_ft = jnp.fft.rfft2(x_masked)                                # (B,C,H,W//2+1) c64
    up_out, dn_out = spectral_apply(x_ft, packed, modes1, modes2)
    out_ft = jnp.zeros((B, C, H, W // 2 + 1), dtype=jnp.complex64)
    out_ft = out_ft.at[:, :, :modes1, :modes2].set(up_out)
    out_ft = out_ft.at[:, :, -modes1:, :modes2].set(dn_out)
    return jnp.fft.irfft2(out_ft, s=(H, W))


# -------------------- param packing (done once, off the hot path) -----------

def pack_params(params, batch_size):
    B = batch_size
    C = params["fc_w"].shape[0]
    M = params["weights1"].shape[1] * params["weights1"].shape[2]

    # per-(b,c) depthwise 1x1 conv params, merged and pre-tiled -> (B*C, 2)
    fc = jnp.stack([jnp.tile(params["fc_w"].reshape(C), (B,)),
                    jnp.tile(params["fc_b"].reshape(C), (B,))],
                   axis=1).astype(jnp.float32)

    def modes(w):            # (C, m1, m2) c64 -> (2, C, B*M) f32, batch-tiled
        wf = w.reshape(C, M)
        return jnp.stack([jnp.tile(jnp.real(wf), (1, B)),
                          jnp.tile(jnp.imag(wf), (1, B))],
                         axis=0).astype(jnp.float32)

    def linear(lin):         # (C, D) c64 -> (2D, 2C) f32 [[LrT,-LiT],[LiT,LrT]]
        lrt = jnp.real(lin).T.astype(jnp.float32)
        lit = jnp.imag(lin).T.astype(jnp.float32)
        return jnp.concatenate(
            [jnp.concatenate([lrt, -lit], axis=1),
             jnp.concatenate([lit, lrt], axis=1)], axis=0)

    def bias(b):             # (1, D, 1, 1) c64 -> (2D, 1) f32 [br; bi]
        D = b.shape[1]
        return jnp.concatenate([jnp.real(b).reshape(D, 1),
                                jnp.imag(b).reshape(D, 1)],
                               axis=0).astype(jnp.float32)

    l1 = linear(params["linear1"])
    l2 = linear(params["linear2"])
    zeros = jnp.zeros_like(l1)
    lin_bd = jnp.concatenate(                                      # (4D, 4C)
        [jnp.concatenate([l1, zeros], axis=1),
         jnp.concatenate([zeros, l2], axis=1)], axis=0)

    return {
        "fc": fc,                                                  # (B*C, 2)
        "wmode": jnp.stack([modes(params["weights1"]),
                            modes(params["weights2"])], axis=0),   # (2,2,C,B*M)
        "lin": lin_bd,                                             # (4D, 4C)
        "bias": jnp.concatenate([bias(params["bias1"]),
                                 bias(params["bias2"])], axis=0),  # (4D, 1)
    }


# ------------------------- reference (pure JAX) ------------------------------

def reference_forward(x, params, modes1, modes2):
    B, C, H, W = x.shape
    mean = jnp.mean(x, axis=(2, 3), keepdims=True)
    th = jax.nn.sigmoid(mean * params["fc_w"].reshape(1, C, 1, 1)
                        + params["fc_b"].reshape(1, C, 1, 1))
    xm = jnp.where(x > th, 0.0, x)
    x_ft = jnp.fft.rfft2(xm)
    out_ft = jnp.zeros((B, C, H, W // 2 + 1), dtype=jnp.complex64)
    up = jnp.einsum('bcxy,cxy->bcxy', x_ft[:, :, :modes1, :modes2],
                    params["weights1"])
    up = jnp.einsum('bchw,cd->bdhw', up, params["linear1"]) + params["bias1"]
    dn = jnp.einsum('bcxy,cxy->bcxy', x_ft[:, :, -modes1:, :modes2],
                    params["weights2"])
    dn = jnp.einsum('bchw,cd->bdhw', dn, params["linear2"]) + params["bias2"]
    out_ft = out_ft.at[:, :, :modes1, :modes2].set(up)
    out_ft = out_ft.at[:, :, -modes1:, :modes2].set(dn)
    return jnp.fft.irfft2(out_ft, s=(H, W))


# ------------------------------ param init -----------------------------------

def init_params(key, in_channels, out_channels, modes1, modes2):
    scale = 1.0 / in_channels
    ks = jax.random.split(key, 8)

    def crand(k, shape, s):        # like scale * torch.rand(..., cfloat)
        kr, ki = jax.random.split(k)
        return (s * (jax.random.uniform(kr, shape)
                     + 1j * jax.random.uniform(ki, shape))).astype(jnp.complex64)

    def cnormal(k, shape):         # like torch.randn(..., cfloat)
        kr, ki = jax.random.split(k)
        return ((jax.random.normal(kr, shape)
                 + 1j * jax.random.normal(ki, shape))
                / jnp.sqrt(2.0)).astype(jnp.complex64)

    return {
        # depthwise 1x1 conv (groups=in_channels): one weight + bias per channel
        "fc_w": jax.random.normal(ks[0], (in_channels,), jnp.float32),
        "fc_b": 0.1 * jax.random.normal(ks[1], (in_channels,), jnp.float32),
        "weights1": crand(ks[2], (in_channels, modes1, modes2), scale),
        "weights2": crand(ks[3], (in_channels, modes1, modes2), scale),
        "linear1": cnormal(ks[4], (in_channels, out_channels)),
        "linear2": cnormal(ks[5], (in_channels, out_channels)),
        "bias1": cnormal(ks[6], (1, out_channels, 1, 1)),
        "bias2": cnormal(ks[7], (1, out_channels, 1, 1)),
    }


# --------------------------------- main ---------------------------------------

if __name__ == "__main__":
    # size=32 (>16) => full=False branch; AvgPool3d kernel (1,32,32) => global pool.
    # out_channels must equal in_channels for the out_ft slice assignment.
    B, C, SIZE = 2, 4, 32
    M1, M2 = 8, 8

    key = jax.random.PRNGKey(0)
    kx, kp = jax.random.split(key)
    x = jax.random.normal(kx, (B, C, SIZE, SIZE), jnp.float32)
    params = init_params(kp, C, C, M1, M2)
    packed = pack_params(params, batch_size=B)   # constants: packed once

    fwd = jax.jit(functools.partial(ffo_conv2d_forward, modes1=M1, modes2=M2))
    y = jax.block_until_ready(fwd(x, packed))

    y_ref = reference_forward(x, params, M1, M2)
    assert y.shape == (B, C, SIZE, SIZE), y.shape
    max_err = float(jnp.max(jnp.abs(y - y_ref)))
    assert jnp.allclose(y, y_ref, rtol=1e-4, atol=1e-4), max_err
    print("KERNEL_OK")
</pallas_src>

<mosaic_0001>
module attributes {stable_mosaic.version = 11 : i64} {
  func.func @_mask_kernel(%arg0: i32, %arg1: memref<8x1024xf32, #tpu.memory_space<vmem>>, %arg2: memref<8x2xf32, #tpu.memory_space<vmem>>, %arg3: memref<8x1024xf32, #tpu.memory_space<vmem>>) attributes {dimension_semantics = [#tpu.dimension_semantics<parallel>], iteration_bounds = array<i64: 1>, scalar_prefetch = 0 : i64, scratch_operands = 0 : i64, tpu.core_type = #tpu.core_type<tc>, window_params = [{transform_indices = @transform_0, window_bounds = array<i64: 8, 1024>}, {transform_indices = @transform_1, window_bounds = array<i64: 8, 2>}, {transform_indices = @transform_2, window_bounds = array<i64: 8, 1024>}]} {
    %c0 = arith.constant 0 : index
    %c0_0 = arith.constant 0 : index
    %0 = vector.load %arg1[%c0, %c0_0] : memref<8x1024xf32, #tpu.memory_space<vmem>>, vector<8x1024xf32>
    %c0_1 = arith.constant 0 : index
    %c0_2 = arith.constant 0 : index
    %1 = vector.load %arg2[%c0_1, %c0_2] : memref<8x2xf32, #tpu.memory_space<vmem>>, vector<8x2xf32>
    %cst = arith.constant dense<0.000000e+00> : vector<8xf32>
    %2 = vector.multi_reduction <add>, %0, %cst [1] : vector<8x1024xf32> to vector<8xf32>
    %3 = vector.shape_cast %2 : vector<8xf32> to vector<8x1xf32>
    %cst_3 = arith.constant 1.024000e+03 : f32
    %4 = vector.broadcast %cst_3 : f32 to vector<8x1xf32>
    %5 = arith.divf %3, %4 : vector<8x1xf32>
    %6 = vector.extract_strided_slice %1 {offsets = [0, 0], sizes = [8, 1], strides = [1, 1]} : vector<8x2xf32> to vector<8x1xf32>
    %7 = arith.mulf %5, %6 : vector<8x1xf32>
    %8 = vector.extract_strided_slice %1 {offsets = [0, 1], sizes = [8, 1], strides = [1, 1]} : vector<8x2xf32> to vector<8x1xf32>
    %9 = arith.addf %7, %8 : vector<8x1xf32>
    %10 = arith.negf %9 : vector<8x1xf32>
    %11 = math.exp %10 : vector<8x1xf32>
    %cst_4 = arith.constant 1.000000e+00 : f32
    %12 = vector.broadcast %cst_4 : f32 to vector<8x1xf32>
    %13 = arith.addf %12, %11 : vector<8x1xf32>
    %14 = arith.divf %12, %13 : vector<8x1xf32>
    %15 = vector.broadcast %14 : vector<8x1xf32> to vector<8x1024xf32>
    %16 = arith.cmpf ogt, %0, %15 : vector<8x1024xf32>
    %cst_5 = arith.constant 0.000000e+00 : f32
    %17 = vector.broadcast %cst_5 : f32 to vector<8x1024xf32>
    %18 = arith.select %16, %17, %0 : vector<8x1024xi1>, vector<8x1024xf32>
    %c0_6 = arith.constant 0 : index
    %c0_7 = arith.constant 0 : index
    %19 = vector.load %arg3[%c0_6, %c0_7] : memref<8x1024xf32, #tpu.memory_space<vmem>>, vector<8x1024xf32>
    tpu.vector_store %arg3[%c0_6, %c0_7], %18 {strides = array<i32>} : memref<8x1024xf32, #tpu.memory_space<vmem>>, vector<8x1024xf32>,
    return
  }
  func.func @transform_0(%arg0: i32) -> (i32, i32) {
    %c0_i32 = arith.constant 0 : i32
    %c0_i32_0 = arith.constant 0 : i32
    return %arg0, %c0_i32 : i32, i32
  }
  func.func @transform_1(%arg0: i32) -> (i32, i32) {
    %c0_i32 = arith.constant 0 : i32
    %c0_i32_0 = arith.constant 0 : i32
    return %arg0, %c0_i32 : i32, i32
  }
  func.func @transform_2(%arg0: i32) -> (i32, i32) {
    %c0_i32 = arith.constant 0 : i32
    %c0_i32_0 = arith.constant 0 : i32
    return %arg0, %c0_i32 : i32, i32
  }
}

module attributes {stable_mosaic.version = 11 : i64} {
  func.func @_spectral_kernel(%arg0: memref<2x2x4x128xf32, #tpu.memory_space<vmem>>, %arg1: memref<2x2x4x128xf32, #tpu.memory_space<vmem>>, %arg2: memref<16x16xf32, #tpu.memory_space<vmem>>, %arg3: memref<16x1xf32, #tpu.memory_space<vmem>>, %arg4: memref<16x128xf32, #tpu.memory_space<vmem>>) attributes {dimension_semantics = [], scalar_prefetch = 0 : i64, scratch_operands = 0 : i64, tpu.core_type = #tpu.core_type<tc>} {
    %c0 = arith.constant 0 : index
    %c0_0 = arith.constant 0 : index
    %c0_1 = arith.constant 0 : index
    %c0_2 = arith.constant 0 : index
    %0 = vector.load %arg0[%c0, %c0_0, %c0_1, %c0_2] : memref<2x2x4x128xf32, #tpu.memory_space<vmem>>, vector<2x2x4x128xf32>
    %c0_3 = arith.constant 0 : index
    %c0_4 = arith.constant 0 : index
    %c0_5 = arith.constant 0 : index
    %c0_6 = arith.constant 0 : index
    %1 = vector.load %arg1[%c0_3, %c0_4, %c0_5, %c0_6] : memref<2x2x4x128xf32, #tpu.memory_space<vmem>>, vector<2x2x4x128xf32>
    %2 = vector.extract_strided_slice %0 {offsets = [0, 0, 0, 0], sizes = [2, 1, 4, 128], strides = [1, 1, 1, 1]} : vector<2x2x4x128xf32> to vector<2x1x4x128xf32>
    %3 = vector.shape_cast %2 : vector<2x1x4x128xf32> to vector<2x4x128xf32>
    %4 = vector.extract_strided_slice %0 {offsets = [0, 1, 0, 0], sizes = [2, 1, 4, 128], strides = [1, 1, 1, 1]} : vector<2x2x4x128xf32> to vector<2x1x4x128xf32>
    %5 = vector.shape_cast %4 : vector<2x1x4x128xf32> to vector<2x4x128xf32>
    %6 = vector.extract_strided_slice %1 {offsets = [0, 0, 0, 0], sizes = [2, 1, 4, 128], strides = [1, 1, 1, 1]} : vector<2x2x4x128xf32> to vector<2x1x4x128xf32>
    %7 = vector.shape_cast %6 : vector<2x1x4x128xf32> to vector<2x4x128xf32>
    %8 = vector.extract_strided_slice %1 {offsets = [0, 1, 0, 0], sizes = [2, 1, 4, 128], strides = [1, 1, 1, 1]} : vector<2x2x4x128xf32> to vector<2x1x4x128xf32>
    %9 = vector.shape_cast %8 : vector<2x1x4x128xf32> to vector<2x4x128xf32>
    %10 = arith.mulf %3, %7 : vector<2x4x128xf32>
    %11 = arith.mulf %5, %9 : vector<2x4x128xf32>
    %12 = arith.subf %10, %11 : vector<2x4x128xf32>
    %13 = arith.mulf %3, %9 : vector<2x4x128xf32>
    %14 = arith.mulf %5, %7 : vector<2x4x128xf32>
    %15 = arith.addf %13, %14 : vector<2x4x128xf32>
    %16 = vector.extract_strided_slice %12 {offsets = [0, 0, 0], sizes = [1, 4, 128], strides = [1, 1, 1]} : vector<2x4x128xf32> to vector<1x4x128xf32>
    %17 = vector.shape_cast %16 : vector<1x4x128xf32> to vector<4x128xf32>
    %18 = vector.extract_strided_slice %15 {offsets = [0, 0, 0], sizes = [1, 4, 128], strides = [1, 1, 1]} : vector<2x4x128xf32> to vector<1x4x128xf32>
    %19 = vector.shape_cast %18 : vector<1x4x128xf32> to vector<4x128xf32>
    %20 = vector.extract_strided_slice %12 {offsets = [1, 0, 0], sizes = [1, 4, 128], strides = [1, 1, 1]} : vector<2x4x128xf32> to vector<1x4x128xf32>
    %21 = vector.shape_cast %20 : vector<1x4x128xf32> to vector<4x128xf32>
    %22 = vector.extract_strided_slice %15 {offsets = [1, 0, 0], sizes = [1, 4, 128], strides = [1, 1, 1]} : vector<2x4x128xf32> to vector<1x4x128xf32>
    %23 = vector.shape_cast %22 : vector<1x4x128xf32> to vector<4x128xf32>
    %24 = tpu.concatenate %17, %19, %21, %23 in 0 : vector<4x128xf32>, vector<4x128xf32>, vector<4x128xf32>, vector<4x128xf32> -> vector<16x128xf32>
    %c0_7 = arith.constant 0 : index
    %c0_8 = arith.constant 0 : index
    %25 = vector.load %arg2[%c0_7, %c0_8] : memref<16x16xf32, #tpu.memory_space<vmem>>, vector<16x16xf32>
    %cst = arith.constant dense<0.000000e+00> : vector<16x128xf32>
    %26 = tpu.matmul %25, %24, %cst {dimension_numbers = #tpu.dot_dimension_numbers<[1], [0], [0], [1], [0, 0, 1, 1], [], []>} : vector<16x16xf32>, vector<16x128xf32>, vector<16x128xf32> -> vector<16x128xf32>
    %c0_9 = arith.constant 0 : index
    %c0_10 = arith.constant 0 : index
    %27 = vector.load %arg3[%c0_9, %c0_10] : memref<16x1xf32, #tpu.memory_space<vmem>>, vector<16x1xf32>
    %28 = vector.broadcast %27 : vector<16x1xf32> to vector<16x128xf32>
    %29 = arith.addf %26, %28 : vector<16x128xf32>
    %c0_11 = arith.constant 0 : index
    %c0_12 = arith.constant 0 : index
    %30 = vector.load %arg4[%c0_11, %c0_12] : memref<16x128xf32, #tpu.memory_space<vmem>>, vector<16x128xf32>
    tpu.vector_store %arg4[%c0_11, %c0_12], %29 {strides = array<i32>} : memref<16x128xf32, #tpu.memory_space<vmem>>, vector<16x128xf32>,
    return
  }
}

</mosaic_0001>

<llo_original>
// kernel: ffo_conv2d_forward.2
$region0: #{ffo_conv2d_forward.2}
  #allocation0 [shape = 'u32[]', space=smem, size = 0x4, offset = 0x4, fixed_abs, tag = 'smem constant byte address 0x4 - core index']
  #allocation1 [shape = 'u32[72,128]{1,0:T(1,128)}', space=vmem, size = 0x9000, scoped, tag = 'internal scratch']
  %s0 = inlined_call_operand.vmem [shape: f32[8,1024], index: 0, kind: input, shape index: {}]
  %s1 = inlined_call_operand.vmem [shape: f32[8,2], index: 1, kind: input, shape index: {}]
  %s2 = inlined_call_operand.vmem [shape: f32[8,1024], index: 2, kind: output, shape index: {}]
  %s3 = sld [smem:[#allocation0]]
  $region18: #{ffo_conv2d_forward.2} parent=0
    _
  %s5 = ssub.s32 1, %s3
  %s6 = scalar_select 0, %s5, %s3
  // Predicated region
  $region2: #{ffo_conv2d_forward.2} parent=0 // pred_check
    _
  $region3: #{ffo_conv2d_forward.2} parent=0 // pred_check_branch
    %8 = sbr.rel (0) target = $region5
  $region4: #{ffo_conv2d_forward.2} parent=0 // pred_region
    _
  $region5: #{ffo_conv2d_forward.2} parent=0 // pred_fallthru
    _
  // Predicated region
  $region6: #{ffo_conv2d_forward.2} parent=0 // pred_check
    _
  $region7: #{ffo_conv2d_forward.2} parent=0 // pred_check_branch
    %10 = sbr.rel (0) target = $region9
  $region8: #{ffo_conv2d_forward.2} parent=0 // pred_region
    _
  $region9: #{ffo_conv2d_forward.2} parent=0 // pred_fallthru
    _
  %v11 = vld [vmem:[%s0] sm:$0xff]
  %v12 = vld [vmem:[%s0 + $0x8] sm:$0xff]
  %v13 = vld [vmem:[%s0 + $0x10] sm:$0xff]
  %v14 = vld [vmem:[%s0 + $0x18] sm:$0xff]
  %v15 = vld [vmem:[%s0 + $0x20] sm:$0xff]
  %v16 = vld [vmem:[%s0 + $0x28] sm:$0xff]
  %v17 = vld [vmem:[%s0 + $0x30] sm:$0xff]
  %v18 = vld [vmem:[%s0 + $0x38] sm:$0xff]
  %v19 = vld [vmem:[%s1] sm:$0xff]
  %v20 = vadd.f32 %v11, %v12
  %v21 = vadd.f32 %v20, %v13
  %v22 = vadd.f32 %v21, %v14
  %v23 = vadd.f32 %v22, %v15
  %v24 = vadd.f32 %v23, %v16
  %v25 = vadd.f32 %v24, %v17
  %v26 = vadd.f32 %v25, %v18
  %27 = vadd.xlane.f32.xlu0 %v26
  %v28 = vpop.xlane.xlu0 %27
  %v29 = vrcp.pop 1024.0
  %v30 = vmul.f32 1024.0, %v29
  %v31 = vsub.f32 1.0, %v30
  %v32 = vmul.f32 %v29, %v31
  %v33 = vadd.f32 %v29, %v32
  %vm34 = vweird.f32 %v29
  %v35 = vsel %vm34, %v29, %v33
  %v36 = vmul.f32 %v28, %v35
  %v37 = vmul.f32 %v36, %v19
  %39 = vrot.lane.b32.xlu0 %v19, 127
  %v40 = vpop.permute.xlu0 %39
  %v42 = vadd.f32 %v37, %v40
  %v43 = vxor.u32 %v42, 2147483648
  %v44 = vmul.f32 %v43, 1.442695
  %v45 = vpow.pop %v44
  %v46 = vadd.f32 %v45, 1.0
  %v47 = vrcp.pop %v46
  %v48 = vmul.f32 %v46, %v47
  %v49 = vsub.f32 1.0, %v48
  %v50 = vmul.f32 %v47, %v49
  %v51 = vadd.f32 %v47, %v50
  %vm52 = vweird.f32 %v46
  %vm53 = vweird.f32 %v47
  %vm54 = vmor %vm52, %vm53
  %v55 = vsel %vm54, %v47, %v51
  %v56 = vand.u32 2147483647, %v46
  %vm57 = vcmp.eq.f32.partialorder %v56, 8.507059e+37
  %v58 = vand.u32 %v46, 2147483648
  %v59 = vor.u32 1.1754944e-38, %v58
  %v60 = vsel %vm57, %v59, %v55
  %v61 = vmul.f32 1.0, %v60
  %63 = vset.pattern.permute.xlu0 0
  %64 = vperm.xlu0 %63, %v61
  %v65 = vpop.permute.xlu0 %64
  %vm67 = vcmp.gt.f32.partialorder %v11, %v65
  %vm68 = vcmp.gt.f32.partialorder %v12, %v65
  %vm69 = vcmp.gt.f32.partialorder %v13, %v65
  %vm70 = vcmp.gt.f32.partialorder %v14, %v65
  %vm71 = vcmp.gt.f32.partialorder %v15, %v65
  %vm72 = vcmp.gt.f32.partialorder %v16, %v65
  %vm73 = vcmp.gt.f32.partialorder %v17, %v65
  %vm74 = vcmp.gt.f32.partialorder %v18, %v65
  %v75 = vsel %vm67, 0.0, %v11
  %v76 = vsel %vm68, 0.0, %v12
  %v77 = vsel %vm69, 0.0, %v13
  %v78 = vsel %vm70, 0.0, %v14
  %v79 = vsel %vm71, 0.0, %v15
  %v80 = vsel %vm72, 0.0, %v16
  %v81 = vsel %vm73, 0.0, %v17
  %v82 = vsel %vm74, 0.0, %v18
  %83 = vst [vmem:[%s2] sm:$0xff] %v75
  %84 = vst [vmem:[%s2 + $0x8] sm:$0xff] %v76
  %85 = vst [vmem:[%s2 + $0x10] sm:$0xff] %v77
  %86 = vst [vmem:[%s2 + $0x18] sm:$0xff] %v78
  %87 = vst [vmem:[%s2 + $0x20] sm:$0xff] %v79
  %88 = vst [vmem:[%s2 + $0x28] sm:$0xff] %v80
  %89 = vst [vmem:[%s2 + $0x30] sm:$0xff] %v81
  %90 = vst [vmem:[%s2 + $0x38] sm:$0xff] %v82
  // Predicated region
  $region10: #{ffo_conv2d_forward.2} parent=0 // pred_check
    _
  $region11: #{ffo_conv2d_forward.2} parent=0 // pred_check_branch
    %92 = sbr.rel (0) target = $region13
  $region12: #{ffo_conv2d_forward.2} parent=0 // pred_region
    _
  $region13: #{ffo_conv2d_forward.2} parent=0 // pred_fallthru
    _
  // Predicated region
  $region14: #{ffo_conv2d_forward.2} parent=0 // pred_check
    _
  $region15: #{ffo_conv2d_forward.2} parent=0 // pred_check_branch
    %94 = sbr.rel (0) target = $region17
  $region16: #{ffo_conv2d_forward.2} parent=0 // pred_region
    _
  $region17: #{ffo_conv2d_forward.2} parent=0 // pred_fallthru
    _

// kernel: ffo_conv2d_forward.3
$region0: #{ffo_conv2d_forward.3}
  #allocation0 [shape = 'u32[]', space=smem, size = 0x4, offset = 0x4, fixed_abs, tag = 'smem constant byte address 0x4 - core index']
  #allocation1 [shape = 'u32[72,128]{1,0:T(1,128)}', space=vmem, size = 0x9000, scoped, tag = 'internal scratch']
  %s0 = inlined_call_operand.vmem [shape: f32[2,2,4,128], index: 0, kind: input, shape index: {}]
  %s1 = inlined_call_operand.vmem [shape: f32[2,2,4,128], index: 1, kind: input, shape index: {}]
  %s2 = inlined_call_operand.vmem [shape: f32[16,16], index: 2, kind: input, shape index: {}]
  %s3 = inlined_call_operand.vmem [shape: f32[16,1], index: 3, kind: input, shape index: {}]
  %s4 = inlined_call_operand.vmem [shape: f32[16,128], index: 4, kind: output, shape index: {}]
  %s5 = sld [smem:[#allocation0]]
  $region26: #{ffo_conv2d_forward.3} parent=0
    _
  %s7 = ssub.s32 1, %s5
  %s8 = scalar_select 0, %s7, %s5
  // Predicated region
  $region2: #{ffo_conv2d_forward.3} parent=0 // pred_check
    _
  $region3: #{ffo_conv2d_forward.3} parent=0 // pred_check_branch
    %10 = sbr.rel (0) target = $region5
  $region4: #{ffo_conv2d_forward.3} parent=0 // pred_region
    _
  $region5: #{ffo_conv2d_forward.3} parent=0 // pred_fallthru
    _
  // Predicated region
  $region6: #{ffo_conv2d_forward.3} parent=0 // pred_check
    _
  $region7: #{ffo_conv2d_forward.3} parent=0 // pred_check_branch
    %12 = sbr.rel (0) target = $region9
  $region8: #{ffo_conv2d_forward.3} parent=0 // pred_region
    _
  $region9: #{ffo_conv2d_forward.3} parent=0 // pred_fallthru
    _
  // Predicated region
  $region10: #{ffo_conv2d_forward.3} parent=0 // pred_check
    _
  $region11: #{ffo_conv2d_forward.3} parent=0 // pred_check_branch
    %14 = sbr.rel (0) target = $region13
  $region12: #{ffo_conv2d_forward.3} parent=0 // pred_region
    _
  $region13: #{ffo_conv2d_forward.3} parent=0 // pred_fallthru
    _
  // Predicated region
  $region14: #{ffo_conv2d_forward.3} parent=0 // pred_check
    _
  $region15: #{ffo_conv2d_forward.3} parent=0 // pred_check_branch
    %16 = sbr.rel (0) target = $region17
  $region16: #{ffo_conv2d_forward.3} parent=0 // pred_region
    _
  $region17: #{ffo_conv2d_forward.3} parent=0 // pred_fallthru
    _
  %v17 = vld [vmem:[%s0] sm:$0xf]
  %v18 = vld [vmem:[%s0 + $0x4] sm:$0xf]
  %v19 = vld [vmem:[%s0 + $0x8] sm:$0xf]
  %v20 = vld [vmem:[%s0 + $0xc] sm:$0xf]
  %v21 = vld [vmem:[%s1] sm:$0xf]
  %v22 = vld [vmem:[%s1 + $0x4] sm:$0xf]
  %v23 = vld [vmem:[%s1 + $0x8] sm:$0xf]
  %v24 = vld [vmem:[%s1 + $0xc] sm:$0xf]
  %v25 = vmul.f32 %v17, %v21
  %v26 = vmul.f32 %v19, %v23
  %v27 = vmul.f32 %v18, %v22
  %v28 = vmul.f32 %v20, %v24
  %v29 = vsub.f32 %v25, %v27
  %v30 = vsub.f32 %v26, %v28
  %v31 = vmul.f32 %v17, %v22
  %v32 = vmul.f32 %v19, %v24
  %v33 = vmul.f32 %v18, %v21
  %v34 = vmul.f32 %v20, %v23
  %v35 = vadd.f32 %v31, %v33
  %v36 = vadd.f32 %v32, %v34
  %v38 = vrot.slane %v35, 4
  %v41 = vrot.slane %v36, 4
  %vm43 = vcmask 1043456
  %v44 = vsel %vm43, %v29, %v38
  %v45 = vsel %vm43, %v30, %v41
  %v46 = vld [vmem:[%s2] sm:$0xff]
  %v47 = vld [vmem:[%s2 + $0x8] sm:$0xff]
  %v48 = vld [vmem:[%s3] sm:$0xff]
  %v49 = vld [vmem:[%s3 + $0x8] sm:$0xff]
  %51 = vset.pattern.permute.xlu0 0
  %52 = vperm.xlu0 %51, %v48
  %v53 = vpop.permute.xlu0 %52
  %56 = vset.pattern.permute.xlu0 0
  %57 = vperm.xlu0 %56, %v49
  %v58 = vpop.permute.xlu0 %57
  %vm60 = vcmask 130048
  %v62 = vsel %vm60, %v46, 0
  %v65 = vsel %vm60, %v47, 0
  %67 = vmatpush.msra.mxu0 0.0
  %68 = vmatpush.msra.mxu0 0.0
  %69 = vmatpush.msra.mxu0 0.0
  %70 = vmatpush.msra.mxu0 0.0
  %71 = vmatpush.msra.mxu0 0.0
  %72 = vmatpush.msra.mxu0 0.0
  %73 = vmatpush.msra.mxu0 0.0
  %74 = vmatpush.msra.mxu0 0.0
  %75 = vmatpush.msra.mxu0 0.0
  %76 = vmatpush.msra.mxu0 0.0
  %77 = vmatpush.msra.mxu0 0.0
  %78 = vmatpush.msra.mxu0 0.0
  %79 = vmatpush.msra.mxu0 0.0
  %80 = vmatpush.msra.mxu0 0.0
  %81 = vmatpush.msra.mxu0 %v45
  %82 = vmatpush.msra.mxu0 %v44
  %83 = vmatmul.f32.gmra.mxu0 %v62
  %v84 = vpop.f32.mrf.mxu0
  %v85 = vadd.f32 %v53, %v84
  %86 = vmatmul.f32.gmra.mxu0 %v65
  %v87 = vpop.f32.mrf.mxu0
  %v88 = vadd.f32 %v58, %v87
  %89 = vdwg.mxu0
  %90 = vst [vmem:[%s4] sm:$0xff] %v85
  %91 = vst [vmem:[%s4 + $0x8] sm:$0xff] %v88
  // Predicated region
  $region18: #{ffo_conv2d_forward.3} parent=0 // pred_check
    _
  $region19: #{ffo_conv2d_forward.3} parent=0 // pred_check_branch
    %93 = sbr.rel (0) target = $region21
  $region20: #{ffo_conv2d_forward.3} parent=0 // pred_region
    _
  $region21: #{ffo_conv2d_forward.3} parent=0 // pred_fallthru
    _
  // Predicated region
  $region22: #{ffo_conv2d_forward.3} parent=0 // pred_check
    _
  $region23: #{ffo_conv2d_forward.3} parent=0 // pred_check_branch
    %95 = sbr.rel (0) target = $region25
  $region24: #{ffo_conv2d_forward.3} parent=0 // pred_region
    _
  $region25: #{ffo_conv2d_forward.3} parent=0 // pred_fallthru
    _

// kernel: reverse.0
$region0: #{reverse.0}
  %s0 = inlined_call_operand.vmem [shape: f32[2,4,32,15], index: 0, kind: input, shape index: {}]
  %s1 = inlined_call_operand.vmem [shape: f32[2,4,32,15], index: 1, kind: output, shape index: {}]
  $region1: #{reverse.0} parent=0
    #allocation0 [shape = 'u8[98304]{0}', space=vmem, size = 0x18000, scoped, tag = 'operand span for operand 0']
    #allocation1 [shape = 'u8[65536]{0}', space=vmem, size = 0x10000, scoped, tag = 'operand span for operand 1']
    %s2 = scalar_lea.vmem [#allocation0], 8
    // Predicated region
    $region2: #{reverse.0} parent=1 // pred_check
      _
    $region3: #{reverse.0} parent=1 // pred_check_branch
      %4 = sbr.rel (0) target = $region5
    $region4: #{reverse.0} parent=1 // pred_region
      // Predicated region
      $region6: #{reverse.0} parent=4 // pred_check
        _
      $region7: #{reverse.0} parent=4 // pred_check_branch
        %6 = sbr.rel (0) target = $region9
      $region8: #{reverse.0} parent=4 // pred_region
        // Predicated region
        $region21: #{reverse.0} parent=8 // pred_check
          _
        $region22: #{reverse.0} parent=8 // pred_check_branch
          %52 = sbr.rel (0) target = $region24
        $region23: #{reverse.0} parent=8 // pred_region
          loop: start=0, step=1, limit=1
          $region25: #{reverse.0} parent=23 // loop_pre_header
            _
          $region26: #{reverse.0} parent=23 // loop_header
            %s54 = sphi 0, %s58
            %p55 = scmp.ge.s32.totalorder %s54, 1
            %s59 = sphi %s0, %s0
            %s60 = sphi %s2, %s2
          $region27: #{reverse.0} parent=23 // loop_header_branch
            %57 = sbr.rel (%p55) target = $region31
          $region28: #{reverse.0} parent=23 // loop_body
            %v61 = vld [vmem:[%s59] sm:$0xff]
            %62 = vst [vmem:[%s60] sm:$0xff] %v61
            %v63 = vld [vmem:[%s59 + $0x8] sm:$0xff]
            %64 = vst [vmem:[%s60 + $0x8] sm:$0xff] %v63
            %v65 = vld [vmem:[%s59 + $0x10] sm:$0xff]
            %66 = vst [vmem:[%s60 + $0x18] sm:$0xff] %v65
            %v67 = vld [vmem:[%s59 + $0x18] sm:$0xff]
            %68 = vst [vmem:[%s60 + $0x20] sm:$0xff] %v67
            %v69 = vld [vmem:[%s59 + $0x20] sm:$0xff]
            %70 = vst [vmem:[%s60 + $0x30] sm:$0xff] %v69
            %v71 = vld [vmem:[%s59 + $0x28] sm:$0xff]
            %72 = vst [vmem:[%s60 + $0x38] sm:$0xff] %v71
            %v73 = vld [vmem:[%s59 + $0x30] sm:$0xff]
            %74 = vst [vmem:[%s60 + $0x48] sm:$0xff] %v73
            %v75 = vld [vmem:[%s59 + $0x38] sm:$0xff]
            %76 = vst [vmem:[%s60 + $0x50] sm:$0xff] %v75
            %v77 = vld [vmem:[%s59 + $0x40] sm:$0xff]
            %78 = vst [vmem:[%s60 + $0x60] sm:$0xff] %v77
            %v79 = vld [vmem:[%s59 + $0x48] sm:$0xff]
            %80 = vst [vmem:[%s60 + $0x68] sm:$0xff] %v79
            %v81 = vld [vmem:[%s59 + $0x50] sm:$0xff]
            %82 = vst [vmem:[%s60 + $0x78] sm:$0xff] %v81
            %v83 = vld [vmem:[%s59 + $0x58] sm:$0xff]
            %84 = vst [vmem:[%s60 + $0x80] sm:$0xff] %v83
            %v85 = vld [vmem:[%s59 + $0x60] sm:$0xff]
            %86 = vst [vmem:[%s60 + $0x90] sm:$0xff] %v85
            %v87 = vld [vmem:[%s59 + $0x68] sm:$0xff]
            %88 = vst [vmem:[%s60 + $0x98] sm:$0xff] %v87
            %v89 = vld [vmem:[%s59 + $0x70] sm:$0xff]
            %90 = vst [vmem:[%s60 + $0xa8] sm:$0xff] %v89
            %v91 = vld [vmem:[%s59 + $0x78] sm:$0xff]
            %92 = vst [vmem:[%s60 + $0xb0] sm:$0xff] %v91
          $region29: #{reverse.0} parent=23 // loop_footer
            %s58 = sadd.s32 1, %s54
          $region30: #{reverse.0} parent=23 // loop_footer_branch
            %53 = sbr.rel target = $region26
          $region31: #{reverse.0} parent=23 // loop_exit
            _
        $region24: #{reverse.0} parent=8 // pred_fallthru
          _
        // Predicated region
        $region32: #{reverse.0} parent=8 // pred_check
          _
        $region33: #{reverse.0} parent=8 // pred_check_branch
          %94 = sbr.rel target = $region35
        $region34: #{reverse.0} parent=8 // pred_region
          _
        $region35: #{reverse.0} parent=8 // pred_fallthru
          _
      $region9: #{reverse.0} parent=4 // pred_fallthru
        _
      // Predicated region
      $region10: #{reverse.0} parent=4 // pred_check
        _
      $region11: #{reverse.0} parent=4 // pred_check_branch
        %8 = sbr.rel target = $region13
      $region12: #{reverse.0} parent=4 // pred_region
        %s10 = ssub.s32 256, 1
        loop: start=0, step=1, limit=1
        $region14: #{reverse.0} parent=12 // loop_pre_header
          _
        $region15: #{reverse.0} parent=12 // loop_header
          %s12 = sphi 0, %s16
          %p13 = scmp.ge.s32.totalorder %s12, 1
          %s17 = sphi %s0, %s0
          %s18 = sphi %s2, %s2
        $region16: #{reverse.0} parent=12 // loop_header_branch
          %15 = sbr.rel (%p13) target = $region20
        $region17: #{reverse.0} parent=12 // loop_body
          %v19 = vld [vmem:[%s17] sm:%s10]
          %20 = vst [vmem:[%s18] sm:%s10] %v19
          %v21 = vld [vmem:[%s17 + $0x8] sm:%s10]
          %22 = vst [vmem:[%s18 + $0x8] sm:%s10] %v21
          %v23 = vld [vmem:[%s17 + $0x10] sm:%s10]
          %24 = vst [vmem:[%s18 + $0x18] sm:%s10] %v23
          %v25 = vld [vmem:[%s17 + $0x18] sm:%s10]
          %26 = vst [vmem:[%s18 + $0x20] sm:%s10] %v25
          %v27 = vld [vmem:[%s17 + $0x20] sm:%s10]
          %28 = vst [vmem:[%s18 + $0x30] sm:%s10] %v27
          %v29 = vld [vmem:[%s17 + $0x28] sm:%s10]
          %30 = vst [vmem:[%s18 + $0x38] sm:%s10] %v29
          %v31 = vld [vmem:[%s17 + $0x30] sm:%s10]
          %32 = vst [vmem:[%s18 + $0x48] sm:%s10] %v31
          %v33 = vld [vmem:[%s17 + $0x38] sm:%s10]
          %34 = vst [vmem:[%s18 + $0x50] sm:%s10] %v33
          %v35 = vld [vmem:[%s17 + $0x40] sm:%s10]
          %36 = vst [vmem:[%s18 + $0x60] sm:%s10] %v35
          %v37 = vld [vmem:[%s17 + $0x48] sm:%s10]
          %38 = vst [vmem:[%s18 + $0x68] sm:%s10] %v37
          %v39 = vld [vmem:[%s17 + $0x50] sm:%s10]
          %40 = vst [vmem:[%s18 + $0x78] sm:%s10] %v39
          %v41 = vld [vmem:[%s17 + $0x58] sm:%s10]
          %42 = vst [vmem:[%s18 + $0x80] sm:%s10] %v41
          %v43 = vld [vmem:[%s17 + $0x60] sm:%s10]
          %44 = vst [vmem:[%s18 + $0x90] sm:%s10] %v43
          %v45 = vld [vmem:[%s17 + $0x68] sm:%s10]
          %46 = vst [vmem:[%s18 + $0x98] sm:%s10] %v45
          %v47 = vld [vmem:[%s17 + $0x70] sm:%s10]
          %48 = vst [vmem:[%s18 + $0xa8] sm:%s10] %v47
          %v49 = vld [vmem:[%s17 + $0x78] sm:%s10]
          %50 = vst [vmem:[%s18 + $0xb0] sm:%s10] %v49
        $region18: #{reverse.0} parent=12 // loop_footer
          %s16 = sadd.s32 1, %s12
        $region19: #{reverse.0} parent=12 // loop_footer_branch
          %11 = sbr.rel target = $region15
        $region20: #{reverse.0} parent=12 // loop_exit
          _
      $region13: #{reverse.0} parent=4 // pred_fallthru
        _
    $region5: #{reverse.0} parent=1 // pred_fallthru
      _
    %95 = vnop
    %s96 = scalar_lea.vmem [#allocation0], 8
    %s97 = scalar_lea.vmem %s96, 7 [#allocation0]
    %v98 = vld [vmem:[%s97] ss:$-1 sm:$0xff]
    %v99 = vrot.slane %v98, 1
    %100 = vst [vmem:[#allocation1] sm:$0xff] %v99
    %s101 = scalar_lea.vmem [#allocation0], 16
    %s102 = scalar_lea.vmem %s101, 7 [#allocation0]
    %v103 = vld [vmem:[%s102] ss:$-1 sm:$0xff]
    %v104 = vrot.slane %v103, 1
    %v105 = vlaneseq
    %v106 = vshrl.u32 %v105, 7
    %vm107 = vcmp.lt.s32.totalorder %v106, 7
    %108 = vst.msk [vmem:[#allocation1] sm:$0xff] %vm107, %v104
    %s109 = scalar_lea.vmem [#allocation1], 8
    %s110 = scalar_lea.vmem [#allocation0], 7
    %v111 = vld [vmem:[%s110] ss:$-1 sm:$0xff]
    %v112 = vrot.slane %v111, 1
    %113 = vst [vmem:[%s109] sm:$0xff] %v112
    %s114 = scalar_lea.vmem [#allocation0], 8
    %s115 = scalar_lea.vmem %s114, 7 [#allocation0]
    %v116 = vld [vmem:[%s115] ss:$-1 sm:$0xff]
    %v117 = vrot.slane %v116, 1
    %v118 = vlaneseq
    %v119 = vshrl.u32 %v118, 7
    %vm120 = vcmp.lt.s32.totalorder %v119, 7
    %121 = vst.msk [vmem:[%s109] sm:$0xff] %vm120, %v117
    %s122 = scalar_lea.vmem [#allocation1], 16
    %s123 = scalar_lea.vmem [#allocation0], 24
    %s124 = scalar_lea.vmem %s123, 8 [#allocation0]
    %s125 = scalar_lea.vmem %s124, 7 [#allocation0]
    %v126 = vld [vmem:[%s125] ss:$-1 sm:$0xff]
    %v127 = vrot.slane %v126, 1
    %128 = vst [vmem:[%s122] sm:$0xff] %v127
    %s129 = scalar_lea.vmem %s123, 16 [#allocation0]
    %s130 = scalar_lea.vmem %s129, 7 [#allocation0]
    %v131 = vld [vmem:[%s130] ss:$-1 sm:$0xff]
    %v132 = vrot.slane %v131, 1
    %v133 = vlaneseq
    %v134 = vshrl.u32 %v133, 7
    %vm135 = vcmp.lt.s32.totalorder %v134, 7
    %136 = vst.msk [vmem:[%s122] sm:$0xff] %vm135, %v132
    %s137 = scalar_lea.vmem %s122, 8 [#allocation1]
    %s138 = scalar_lea.vmem %s123, 7 [#allocation0]
    %v139 = vld [vmem:[%s138] ss:$-1 sm:$0xff]
    %v140 = vrot.slane %v139, 1
    %141 = vst [vmem:[%s137] sm:$0xff] %v140
    %s142 = scalar_lea.vmem %s123, 8 [#allocation0]
    %s143 = scalar_lea.vmem %s142, 7 [#allocation0]
    %v144 = vld [vmem:[%s143] ss:$-1 sm:$0xff]
    %v145 = vrot.slane %v144, 1
    %v146 = vlaneseq
    %v147 = vshrl.u32 %v146, 7
    %vm148 = vcmp.lt.s32.totalorder %v147, 7
    %149 = vst.msk [vmem:[%s137] sm:$0xff] %vm148, %v145
    %s150 = scalar_lea.vmem [#allocation1], 32
    %s151 = scalar_lea.vmem [#allocation0], 48
    %s152 = scalar_lea.vmem %s151, 8 [#allocation0]
    %s153 = scalar_lea.vmem %s152, 7 [#allocation0]
    %v154 = vld [vmem:[%s153] ss:$-1 sm:$0xff]
    %v155 = vrot.slane %v154, 1
    %156 = vst [vmem:[%s150] sm:$0xff] %v155
    %s157 = scalar_lea.vmem %s151, 16 [#allocation0]
    %s158 = scalar_lea.vmem %s157, 7 [#allocation0]
    %v159 = vld [vmem:[%s158] ss:$-1 sm:$0xff]
    %v160 = vrot.slane %v159, 1
    %v161 = vlaneseq
    %v162 = vshrl.u32 %v161, 7
    %vm163 = vcmp.lt.s32.totalorder %v162, 7
    %164 = vst.msk [vmem:[%s150] sm:$0xff] %vm163, %v160
    %s165 = scalar_lea.vmem %s150, 8 [#allocation1]
    %s166 = scalar_lea.vmem %s151, 7 [#allocation0]
    %v167 = vld [vmem:[%s166] ss:$-1 sm:$0xff]
    %v168 = vrot.slane %v167, 1
    %169 = vst [vmem:[%s165] sm:$0xff] %v168
    %s170 = scalar_lea.vmem %s151, 8 [#allocation0]
    %s171 = scalar_lea.vmem %s170, 7 [#allocation0]
    %v172 = vld [vmem:[%s171] ss:$-1 sm:$0xff]
    %v173 = vrot.slane %v172, 1
    %v174 = vlaneseq
    %v175 = vshrl.u32 %v174, 7
    %vm176 = vcmp.lt.s32.totalorder %v175, 7
    %177 = vst.msk [vmem:[%s165] sm:$0xff] %vm176, %v173
    %s178 = scalar_lea.vmem [#allocation1], 48
    %s179 = scalar_lea.vmem [#allocation0], 72
    %s180 = scalar_lea.vmem %s179, 8 [#allocation0]
    %s181 = scalar_lea.vmem %s180, 7 [#allocation0]
    %v182 = vld [vmem:[%s181] ss:$-1 sm:$0xff]
    %v183 = vrot.slane %v182, 1
    %184 = vst [vmem:[%s178] sm:$0xff] %v183
    %s185 = scalar_lea.vmem %s179, 16 [#allocation0]
    %s186 = scalar_lea.vmem %s185, 7 [#allocation0]
    %v187 = vld [vmem:[%s186] ss:$-1 sm:$0xff]
    %v188 = vrot.slane %v187, 1
    %v189 = vlaneseq
    %v190 = vshrl.u32 %v189, 7
    %vm191 = vcmp.lt.s32.totalorder %v190, 7
    %192 = vst.msk [vmem:[%s178] sm:$0xff] %vm191, %v188
    %s193 = scalar_lea.vmem %s178, 8 [#allocation1]
    %s194 = scalar_lea.vmem %s179, 7 [#allocation0]
    %v195 = vld [vmem:[%s194] ss:$-1 sm:$0xff]
    %v196 = vrot.slane %v195, 1
    %197 = vst [vmem:[%s193] sm:$0xff] %v196
    %s198 = scalar_lea.vmem %s179, 8 [#allocation0]
    %s199 = scalar_lea.vmem %s198, 7 [#allocation0]
    %v200 = vld [vmem:[%s199] ss:$-1 sm:$0xff]
    %v201 = vrot.slane %v200, 1
    %v202 = vlaneseq
    %v203 = vshrl.u32 %v202, 7
    %vm204 = vcmp.lt.s32.totalorder %v203, 7
    %205 = vst.msk [vmem:[%s193] sm:$0xff] %vm204, %v201
    %s206 = scalar_lea.vmem [#allocation1], 64
    %s207 = scalar_lea.vmem [#allocation0], 96
    %s208 = scalar_lea.vmem %s207, 8 [#allocation0]
    %s209 = scalar_lea.vmem %s208, 7 [#allocation0]
    %v210 = vld [vmem:[%s209] ss:$-1 sm:$0xff]
    %v211 = vrot.slane %v210, 1
    %212 = vst [vmem:[%s206] sm:$0xff] %v211
    %s213 = scalar_lea.vmem %s207, 16 [#allocation0]
    %s214 = scalar_lea.vmem %s213, 7 [#allocation0]
    %v215 = vld [vmem:[%s214] ss:$-1 sm:$0xff]
    %v216 = vrot.slane %v215, 1
    %v217 = vlaneseq
    %v218 = vshrl.u32 %v217, 7
    %vm219 = vcmp.lt.s32.totalorder %v218, 7
    %220 = vst.msk [vmem:[%s206] sm:$0xff] %vm219, %v216
    %s221 = scalar_lea.vmem %s206, 8 [#allocation1]
    %s222 = scalar_lea.vmem %s207, 7 [#allocation0]
    %v223 = vld [vmem:[%s222] ss:$-1 sm:$0xff]
    %v224 = vrot.slane %v223, 1
    %225 = vst [vmem:[%s221] sm:$0xff] %v224
    %s226 = scalar_lea.vmem %s207, 8 [#allocation0]
    %s227 = scalar_lea.vmem %s226, 7 [#allocation0]
    %v228 = vld [vmem:[%s227] ss:$-1 sm:$0xff]
    %v229 = vrot.slane %v228, 1
    %v230 = vlaneseq
    %v231 = vshrl.u32 %v230, 7
    %vm232 = vcmp.lt.s32.totalorder %v231, 7
    %233 = vst.msk [vmem:[%s221] sm:$0xff] %vm232, %v229
    %s234 = scalar_lea.vmem [#allocation1], 80
    %s235 = scalar_lea.vmem [#allocation0], 120
    %s236 = scalar_lea.vmem %s235, 8 [#allocation0]
    %s237 = scalar_lea.vmem %s236, 7 [#allocation0]
    %v238 = vld [vmem:[%s237] ss:$-1 sm:$0xff]
    %v239 = vrot.slane %v238, 1
    %240 = vst [vmem:[%s234] sm:$0xff] %v239
    %s241 = scalar_lea.vmem %s235, 16 [#allocation0]
    %s242 = scalar_lea.vmem %s241, 7 [#allocation0]
    %v243 = vld [vmem:[%s242] ss:$-1 sm:$0xff]
    %v244 = vrot.slane %v243, 1
    %v245 = vlaneseq
    %v246 = vshrl.u32 %v245, 7
    %vm247 = vcmp.lt.s32.totalorder %v246, 7
    %248 = vst.msk [vmem:[%s234] sm:$0xff] %vm247, %v244
    %s249 = scalar_lea.vmem %s234, 8 [#allocation1]
    %s250 = scalar_lea.vmem %s235, 7 [#allocation0]
    %v251 = vld [vmem:[%s250] ss:$-1 sm:$0xff]
    %v252 = vrot.slane %v251, 1
    %253 = vst [vmem:[%s249] sm:$0xff] %v252
    %s254 = scalar_lea.vmem %s235, 8 [#allocation0]
    %s255 = scalar_lea.vmem %s254, 7 [#allocation0]
    %v256 = vld [vmem:[%s255] ss:$-1 sm:$0xff]
    %v257 = vrot.slane %v256, 1
    %v258 = vlaneseq
    %v259 = vshrl.u32 %v258, 7
    %vm260 = vcmp.lt.s32.totalorder %v259, 7
    %261 = vst.msk [vmem:[%s249] sm:$0xff] %vm260, %v257
    %s262 = scalar_lea.vmem [#allocation1], 96
    %s263 = scalar_lea.vmem [#allocation0], 144
    %s264 = scalar_lea.vmem %s263, 8 [#allocation0]
    %s265 = scalar_lea.vmem %s264, 7 [#allocation0]
    %v266 = vld [vmem:[%s265] ss:$-1 sm:$0xff]
    %v267 = vrot.slane %v266, 1
    %268 = vst [vmem:[%s262] sm:$0xff] %v267
    %s269 = scalar_lea.vmem %s263, 16 [#allocation0]
    %s270 = scalar_lea.vmem %s269, 7 [#allocation0]
    %v271 = vld [vmem:[%s270] ss:$-1 sm:$0xff]
    %v272 = vrot.slane %v271, 1
    %v273 = vlaneseq
    %v274 = vshrl.u32 %v273, 7
    %vm275 = vcmp.lt.s32.totalorder %v274, 7
    %276 = vst.msk [vmem:[%s262] sm:$0xff] %vm275, %v272
    %s277 = scalar_lea.vmem %s262, 8 [#allocation1]
    %s278 = scalar_lea.vmem %s263, 7 [#allocation0]
    %v279 = vld [vmem:[%s278] ss:$-1 sm:$0xff]
    %v280 = vrot.slane %v279, 1
    %281 = vst [vmem:[%s277] sm:$0xff] %v280
    %s282 = scalar_lea.vmem %s263, 8 [#allocation0]
    %s283 = scalar_lea.vmem %s282, 7 [#allocation0]
    %v284 = vld [vmem:[%s283] ss:$-1 sm:$0xff]
    %v285 = vrot.slane %v284, 1
    %v286 = vlaneseq
    %v287 = vshrl.u32 %v286, 7
    %vm288 = vcmp.lt.s32.totalorder %v287, 7
    %289 = vst.msk [vmem:[%s277] sm:$0xff] %vm288, %v285
    %s290 = scalar_lea.vmem [#allocation1], 112
    %s291 = scalar_lea.vmem [#allocation0], 168
    %s292 = scalar_lea.vmem %s291, 8 [#allocation0]
    %s293 = scalar_lea.vmem %s292, 7 [#allocation0]
    %v294 = vld [vmem:[%s293] ss:$-1 sm:$0xff]
    %v295 = vrot.slane %v294, 1
    %296 = vst [vmem:[%s290] sm:$0xff] %v295
    %s297 = scalar_lea.vmem %s291, 16 [#allocation0]
    %s298 = scalar_lea.vmem %s297, 7 [#allocation0]
    %v299 = vld [vmem:[%s298] ss:$-1 sm:$0xff]
    %v300 = vrot.slane %v299, 1
    %v301 = vlaneseq
    %v302 = vshrl.u32 %v301, 7
    %vm303 = vcmp.lt.s32.totalorder %v302, 7
    %304 = vst.msk [vmem:[%s290] sm:$0xff] %vm303, %v300
    %s305 = scalar_lea.vmem %s290, 8 [#allocation1]
    %s306 = scalar_lea.vmem %s291, 7 [#allocation0]
    %v307 = vld [vmem:[%s306] ss:$-1 sm:$0xff]
    %v308 = vrot.slane %v307, 1
    %309 = vst [vmem:[%s305] sm:$0xff] %v308
    %s310 = scalar_lea.vmem %s291, 8 [#allocation0]
    %s311 = scalar_lea.vmem %s310, 7 [#allocation0]
    %v312 = vld [vmem:[%s311] ss:$-1 sm:$0xff]
    %v313 = vrot.slane %v312, 1
    %v314 = vlaneseq
    %v315 = vshrl.u32 %v314, 7
    %vm316 = vcmp.lt.s32.totalorder %v315, 7
    %317 = vst.msk [vmem:[%s305] sm:$0xff] %vm316, %v313
    // Predicated region
    $region36: #{reverse.0} parent=1 // pred_check
      _
    $region37: #{reverse.0} parent=1 // pred_check_branch
      %319 = sbr.rel (0) target = $region39
    $region38: #{reverse.0} parent=1 // pred_region
      // Predicated region
      $region40: #{reverse.0} parent=38 // pred_check
        _
      $region41: #{reverse.0} parent=38 // pred_check_branch
        %321 = sbr.rel (0) target = $region43
      $region42: #{reverse.0} parent=38 // pred_region
        // Predicated region
        $region55: #{reverse.0} parent=42 // pred_check
          _
        $region56: #{reverse.0} parent=42 // pred_check_branch
          %367 = sbr.rel (0) target = $region58
        $region57: #{reverse.0} parent=42 // pred_region
          loop: start=0, step=1, limit=1
          $region59: #{reverse.0} parent=57 // loop_pre_header
            _
          $region60: #{reverse.0} parent=57 // loop_header
            %s369 = sphi 0, %s373
            %p370 = scmp.ge.s32.totalorder %s369, 1
            %s374 = sphi [#allocation1], [#allocation1]
            %s375 = sphi %s1, %s1
          $region61: #{reverse.0} parent=57 // loop_header_branch
            %372 = sbr.rel (%p370) target = $region65
          $region62: #{reverse.0} parent=57 // loop_body
            %v376 = vld [vmem:[%s374] sm:$0xff]
            %377 = vst [vmem:[%s375] sm:$0xff] %v376
            %v378 = vld [vmem:[%s374 + $0x8] sm:$0xff]
            %379 = vst [vmem:[%s375 + $0x8] sm:$0xff] %v378
            %v380 = vld [vmem:[%s374 + $0x10] sm:$0xff]
            %381 = vst [vmem:[%s375 + $0x10] sm:$0xff] %v380
            %v382 = vld [vmem:[%s374 + $0x18] sm:$0xff]
            %383 = vst [vmem:[%s375 + $0x18] sm:$0xff] %v382
            %v384 = vld [vmem:[%s374 + $0x20] sm:$0xff]
            %385 = vst [vmem:[%s375 + $0x20] sm:$0xff] %v384
            %v386 = vld [vmem:[%s374 + $0x28] sm:$0xff]
            %387 = vst [vmem:[%s375 + $0x28] sm:$0xff] %v386
            %v388 = vld [vmem:[%s374 + $0x30] sm:$0xff]
            %389 = vst [vmem:[%s375 + $0x30] sm:$0xff] %v388
            %v390 = vld [vmem:[%s374 + $0x38] sm:$0xff]
            %391 = vst [vmem:[%s375 + $0x38] sm:$0xff] %v390
            %v392 = vld [vmem:[%s374 + $0x40] sm:$0xff]
            %393 = vst [vmem:[%s375 + $0x40] sm:$0xff] %v392
            %v394 = vld [vmem:[%s374 + $0x48] sm:$0xff]
            %395 = vst [vmem:[%s375 + $0x48] sm:$0xff] %v394
            %v396 = vld [vmem:[%s374 + $0x50] sm:$0xff]
            %397 = vst [vmem:[%s375 + $0x50] sm:$0xff] %v396
            %v398 = vld [vmem:[%s374 + $0x58] sm:$0xff]
            %399 = vst [vmem:[%s375 + $0x58] sm:$0xff] %v398
            %v400 = vld [vmem:[%s374 + $0x60] sm:$0xff]
            %401 = vst [vmem:[%s375 + $0x60] sm:$0xff] %v400
            %v402 = vld [vmem:[%s374 + $0x68] sm:$0xff]
            %403 = vst [vmem:[%s375 + $0x68] sm:$0xff] %v402
            %v404 = vld [vmem:[%s374 + $0x70] sm:$0xff]
            %405 = vst [vmem:[%s375 + $0x70] sm:$0xff] %v404
            %v406 = vld [vmem:[%s374 + $0x78] sm:$0xff]
            %407 = vst [vmem:[%s375 + $0x78] sm:$0xff] %v406
          $region63: #{reverse.0} parent=57 // loop_footer
            %s373 = sadd.s32 1, %s369
          $region64: #{reverse.0} parent=57 // loop_footer_branch
            %368 = sbr.rel target = $region60
          $region65: #{reverse.0} parent=57 // loop_exit
            _
        $region58: #{reverse.0} parent=42 // pred_fallthru
          _
        // Predicated region
        $region66: #{reverse.0} parent=42 // pred_check
          _
        $region67: #{reverse.0} parent=42 // pred_check_branch
          %409 = sbr.rel target = $region69
        $region68: #{reverse.0} parent=42 // pred_region
          _
        $region69: #{reverse.0} parent=42 // pred_fallthru
          _
      $region43: #{reverse.0} parent=38 // pred_fallthru
        _
      // Predicated region
      $region44: #{reverse.0} parent=38 // pred_check
        _
      $region45: #{reverse.0} parent=38 // pred_check_branch
        %323 = sbr.rel target = $region47
      $region46: #{reverse.0} parent=38 // pred_region
        %s325 = ssub.s32 256, 1
        loop: start=0, step=1, limit=1
        $region48: #{reverse.0} parent=46 // loop_pre_header
          _
        $region49: #{reverse.0} parent=46 // loop_header
          %s327 = sphi 0, %s331
          %p328 = scmp.ge.s32.totalorder %s327, 1
          %s332 = sphi [#allocation1], [#allocation1]
          %s333 = sphi %s1, %s1
        $region50: #{reverse.0} parent=46 // loop_header_branch
          %330 = sbr.rel (%p328) target = $region54
        $region51: #{reverse.0} parent=46 // loop_body
          %v334 = vld [vmem:[%s332] sm:%s325]
          %335 = vst [vmem:[%s333] sm:%s325] %v334
          %v336 = vld [vmem:[%s332 + $0x8] sm:%s325]
          %337 = vst [vmem:[%s333 + $0x8] sm:%s325] %v336
          %v338 = vld [vmem:[%s332 + $0x10] sm:%s325]
          %339 = vst [vmem:[%s333 + $0x10] sm:%s325] %v338
          %v340 = vld [vmem:[%s332 + $0x18] sm:%s325]
          %341 = vst [vmem:[%s333 + $0x18] sm:%s325] %v340
          %v342 = vld [vmem:[%s332 + $0x20] sm:%s325]
          %343 = vst [vmem:[%s333 + $0x20] sm:%s325] %v342
          %v344 = vld [vmem:[%s332 + $0x28] sm:%s325]
          %345 = vst [vmem:[%s333 + $0x28] sm:%s325] %v344
          %v346 = vld [vmem:[%s332 + $0x30] sm:%s325]
          %347 = vst [vmem:[%s333 + $0x30] sm:%s325] %v346
          %v348 = vld [vmem:[%s332 + $0x38] sm:%s325]
          %349 = vst [vmem:[%s333 + $0x38] sm:%s325] %v348
          %v350 = vld [vmem:[%s332 + $0x40] sm:%s325]
          %351 = vst [vmem:[%s333 + $0x40] sm:%s325] %v350
          %v352 = vld [vmem:[%s332 + $0x48] sm:%s325]
          %353 = vst [vmem:[%s333 + $0x48] sm:%s325] %v352
          %v354 = vld [vmem:[%s332 + $0x50] sm:%s325]
          %355 = vst [vmem:[%s333 + $0x50] sm:%s325] %v354
          %v356 = vld [vmem:[%s332 + $0x58] sm:%s325]
          %357 = vst [vmem:[%s333 + $0x58] sm:%s325] %v356
          %v358 = vld [vmem:[%s332 + $0x60] sm:%s325]
          %359 = vst [vmem:[%s333 + $0x60] sm:%s325] %v358
          %v360 = vld [vmem:[%s332 + $0x68] sm:%s325]
          %361 = vst [vmem:[%s333 + $0x68] sm:%s325] %v360
          %v362 = vld [vmem:[%s332 + $0x70] sm:%s325]
          %363 = vst [vmem:[%s333 + $0x70] sm:%s325] %v362
          %v364 = vld [vmem:[%s332 + $0x78] sm:%s325]
          %365 = vst [vmem:[%s333 + $0x78] sm:%s325] %v364
        $region52: #{reverse.0} parent=46 // loop_footer
          %s331 = sadd.s32 1, %s327
        $region53: #{reverse.0} parent=46 // loop_footer_branch
          %326 = sbr.rel target = $region49
        $region54: #{reverse.0} parent=46 // loop_exit
          _
      $region47: #{reverse.0} parent=38 // pred_fallthru
        _
    $region39: #{reverse.0} parent=1 // pred_fallthru
      _
    %410 = vnop

</llo_original>
